<compile_context>
chip_gen: v6e
topology: v6e:2x2x1
jax: 0.10.0
libtpu: 0.0.40
codegen_flags: <defaults>
</compile_context>

<pallas_src>
import functools

import jax
import jax.numpy as jnp
from jax.experimental import pallas as pl
from jax.experimental.pallas import tpu as pltpu

EPS = 1e-3             # nn.BatchNorm2d(eps=0.001)
LANE = 128
VMEM_LIMIT = 32 << 20  # safe on v5e/v6e (128 MiB) and v7x (64 MiB physical)


def _round_up(x, m):
    return (x + m - 1) // m * m


# ---------------------------------------------------------------------------
# Fused path: conv matmul + BN stats + BN affine in ONE kernel.
# Output block is resident in VMEM across the whole grid (constant index map),
# so the normalized result hits HBM exactly once.
# ---------------------------------------------------------------------------
def _conv_bn_fused_kernel(p_ref, w_ref, g_ref, b_ref,
                          out_ref, acc_sum, acc_sq,
                          *, inv_m, eps, tm):
    i = pl.program_id(0)

    @pl.when(i == 0)
    def _():
        acc_sum[...] = jnp.zeros_like(acc_sum)
        acc_sq[...] = jnp.zeros_like(acc_sq)

    # Conv tile as an MXU matmul; f32 accumulation regardless of operand dtype.
    y = jnp.dot(p_ref[...], w_ref[...], preferred_element_type=jnp.float32)
    row = pl.multiple_of(i * tm, tm)
    out_ref[pl.ds(row, tm), :] = y

    # Padded rows of `patches` are exact zeros -> contribute 0 to both sums;
    # dividing by the true M (baked into inv_m) keeps the stats exact.
    acc_sum[...] += jnp.sum(y, axis=0, keepdims=True)
    acc_sq[...] += jnp.sum(y * y, axis=0, keepdims=True)

    @pl.when(i == pl.num_programs(0) - 1)
    def _():
        mean = acc_sum[...] * inv_m
        var = acc_sq[...] * inv_m - mean * mean           # single-pass stats
        scale = g_ref[...] * jax.lax.rsqrt(var + eps)
        shift = b_ref[...] - mean * scale
        # One FMA over the resident conv result; single HBM write afterwards.
        out_ref[...] = out_ref[...] * scale + shift


# ---------------------------------------------------------------------------
# Fallback (large M): conv matmul + stats only; the affine is fused by XLA into
# the unpad/transpose epilogue in the wrapper (no second pallas round trip).
# ---------------------------------------------------------------------------
def _conv_stats_kernel(p_ref, w_ref, g_ref, b_ref,
                       y_ref, scale_ref, shift_ref,
                       acc_sum, acc_sq,
                       *, inv_m, eps):
    i = pl.program_id(0)

    @pl.when(i == 0)
    def _():
        acc_sum[...] = jnp.zeros_like(acc_sum)
        acc_sq[...] = jnp.zeros_like(acc_sq)

    y = jnp.dot(p_ref[...], w_ref[...], preferred_element_type=jnp.float32)
    y_ref[...] = y
    acc_sum[...] += jnp.sum(y, axis=0, keepdims=True)
    acc_sq[...] += jnp.sum(y * y, axis=0, keepdims=True)

    @pl.when(i == pl.num_programs(0) - 1)
    def _():
        mean = acc_sum[...] * inv_m
        var = acc_sq[...] * inv_m - mean * mean
        scale = g_ref[...] * jax.lax.rsqrt(var + eps)
        scale_ref[...] = scale
        shift_ref[...] = b_ref[...] - mean * scale


def conv_bn_forward(x, w, gamma, beta, stride=1, padding='same',
                    tile_m=512, compute_dtype=jnp.float32):
    """x: (N, Cin, H, W) NCHW; w: (Cout, Cin, KH, KW) OIHW; gamma/beta: (Cout,)."""
    N, Cin, H, W = x.shape
    Cout, _, KH, KW = w.shape
    pad = (KH - 1) // 2 if padding == 'same' else padding
    OH = (H + 2 * pad - KH) // stride + 1
    OW = (W + 2 * pad - KW) // stride + 1
    M = N * OH * OW
    K = Cin * KH * KW                       # NOT padded to 128 (full-extent block)

    OCp = _round_up(Cout, LANE)             # lane-dense output stores
    TM = min(tile_m, _round_up(M, 8))
    assert TM % 8 == 0
    Mp = _round_up(M, TM)
    num_tiles = Mp // TM

    # --- glue: im2col built directly in NHWC order (no post-stack transpose). ---
    x_nhwc = jnp.transpose(x, (0, 2, 3, 1))
    xp = jnp.pad(x_nhwc, ((0, 0), (pad, pad), (pad, pad), (0, 0)))
    cols = [xp[:, kh:kh + stride * OH:stride, kw:kw + stride * OW:stride, :]
            for kh in range(KH) for kw in range(KW)]
    patches = jnp.concatenate(cols, axis=-1).reshape(M, K)          # k = (kh,kw,cin)
    wmat = jnp.transpose(w, (2, 3, 1, 0)).reshape(K, Cout)          # matching K order

    patches = jnp.pad(patches, ((0, Mp - M), (0, 0))).astype(compute_dtype)
    wmat = jnp.pad(wmat, ((0, 0), (0, OCp - Cout))).astype(compute_dtype)
    g = jnp.pad(gamma.astype(jnp.float32), (0, OCp - Cout)).reshape(1, OCp)
    b = jnp.pad(beta.astype(jnp.float32), (0, OCp - Cout)).reshape(1, OCp)

    itemsize = jnp.dtype(compute_dtype).itemsize
    # Conservative VMEM estimate for the fused (resident-output) path.
    fused_bytes = (2 * Mp * OCp * 4            # resident output (x2 safety margin)
                   + 2 * TM * K * itemsize     # double-buffered patches tile
                   + 2 * K * OCp * itemsize    # weights
                   + 8 * OCp * 4)              # gamma/beta + stat scratch
    use_fused = fused_bytes <= (VMEM_LIMIT * 3) // 4

    in_specs = [
        pl.BlockSpec((TM, K), lambda i: (i, 0)),     # streamed patches tiles
        pl.BlockSpec((K, OCp), lambda i: (0, 0)),    # resident weights
        pl.BlockSpec((1, OCp), lambda i: (0, 0)),    # gamma
        pl.BlockSpec((1, OCp), lambda i: (0, 0)),    # beta
    ]
    stat_scratch = [pltpu.VMEM((1, OCp), jnp.float32),
                    pltpu.VMEM((1, OCp), jnp.float32)]

    if use_fused:
        kernel = functools.partial(_conv_bn_fused_kernel,
                                   inv_m=1.0 / M, eps=EPS, tm=TM)
        out_flat = pl.pallas_call(
            kernel,
            out_shape=jax.ShapeDtypeStruct((Mp, OCp), jnp.float32),
            grid_spec=pltpu.PrefetchScalarGridSpec(
                num_scalar_prefetch=0,
                grid=(num_tiles,),
                in_specs=in_specs,
                out_specs=pl.BlockSpec((Mp, OCp), lambda i: (0, 0)),  # resident out
                scratch_shapes=stat_scratch,
            ),
            compiler_params=pltpu.CompilerParams(
                dimension_semantics=("arbitrary",),
                vmem_limit_bytes=VMEM_LIMIT),
        )(patches, wmat, g, b)
        out = out_flat[:M, :Cout]
    else:
        kernel = functools.partial(_conv_stats_kernel, inv_m=1.0 / M, eps=EPS)
        y, scale, shift = pl.pallas_call(
            kernel,
            out_shape=(jax.ShapeDtypeStruct((Mp, OCp), jnp.float32),
                       jax.ShapeDtypeStruct((1, OCp), jnp.float32),
                       jax.ShapeDtypeStruct((1, OCp), jnp.float32)),
            grid_spec=pltpu.PrefetchScalarGridSpec(
                num_scalar_prefetch=0,
                grid=(num_tiles,),
                in_specs=in_specs,
                out_specs=[
                    pl.BlockSpec((TM, OCp), lambda i: (i, 0)),  # y tiles (lane-dense)
                    pl.BlockSpec((1, OCp), lambda i: (0, 0)),   # fused scale
                    pl.BlockSpec((1, OCp), lambda i: (0, 0)),   # fused shift
                ],
                scratch_shapes=stat_scratch,
            ),
            compiler_params=pltpu.CompilerParams(
                dimension_semantics=("arbitrary",),
                vmem_limit_bytes=VMEM_LIMIT),
        )(patches, wmat, g, b)
        # BN affine in plain jnp: XLA fuses it with the unpad + NCHW transpose
        # below, so no standalone (Mp, OCp) HBM round trip is emitted.
        out = y[:M, :Cout] * scale[0, :Cout] + shift[0, :Cout]

    out = out.reshape(N, OH, OW, Cout)
    return jnp.transpose(out, (0, 3, 1, 2))
    # TODO(synk): BatchNorm running_mean/running_var (momentum=0.03) state update
    # is a training-time side effect, not part of the forward output; not emitted.


def reference_conv_bn(x, w, gamma, beta, stride, pad):
    y = jax.lax.conv_general_dilated(
        x, w, window_strides=(stride, stride),
        padding=[(pad, pad), (pad, pad)],
        dimension_numbers=('NCHW', 'OIHW', 'NCHW'))
    mean = y.mean(axis=(0, 2, 3), keepdims=True)
    var = ((y - mean) ** 2).mean(axis=(0, 2, 3), keepdims=True)
    return ((y - mean) / jnp.sqrt(var + EPS)) * gamma.reshape(1, -1, 1, 1) \
        + beta.reshape(1, -1, 1, 1)


if __name__ == "__main__":
    # ConvBn(in_channels=4, out_channels=8, kernel_size=3, stride=1,
    #        padding='same', groups=1, bias=False)
    N, Cin, H, W = 2, 4, 16, 16
    Cout, KH, KW = 8, 3, 3
    stride, padding = 1, 'same'

    key = jax.random.PRNGKey(0)
    kx, kw = jax.random.split(key)
    x = jax.random.normal(kx, (N, Cin, H, W), dtype=jnp.float32)
    w = jax.random.normal(kw, (Cout, Cin, KH, KW), dtype=jnp.float32) * 0.1
    # BatchNorm2d default init: weight=1, bias=0.
    gamma = jnp.ones((Cout,), dtype=jnp.float32)
    beta = jnp.zeros((Cout,), dtype=jnp.float32)

    out = conv_bn_forward(x, w, gamma, beta, stride=stride, padding=padding)
    out = jax.block_until_ready(out)

    pad = (KH - 1) // 2
    ref = reference_conv_bn(x, w, gamma, beta, stride, pad)
    assert out.shape == ref.shape == (N, Cout, H, W)
    assert jnp.allclose(out, ref, atol=1e-4, rtol=1e-4), \
        f"max abs diff {jnp.max(jnp.abs(out - ref))}"
    print("KERNEL_OK")
</pallas_src>

<mosaic_0001>
module attributes {stable_mosaic.version = 11 : i64} {
  func.func @_conv_bn_fused_kernel(%arg0: i32, %arg1: memref<512x36xf32, #tpu.memory_space<vmem>>, %arg2: memref<36x128xf32, #tpu.memory_space<vmem>>, %arg3: memref<1x128xf32, #tpu.memory_space<vmem>>, %arg4: memref<1x128xf32, #tpu.memory_space<vmem>>, %arg5: memref<512x128xf32, #tpu.memory_space<vmem>>, %arg6: memref<1x128xf32, #tpu.memory_space<vmem>>, %arg7: memref<1x128xf32, #tpu.memory_space<vmem>>) attributes {dimension_semantics = [#tpu.dimension_semantics<arbitrary>], iteration_bounds = array<i64: 1>, scalar_prefetch = 0 : i64, scratch_operands = 2 : i64, tpu.core_type = #tpu.core_type<tc>, window_params = [{transform_indices = @transform_0, window_bounds = array<i64: 512, 36>}, {pipeline_mode = #tpu.pipeline_mode<synchronous>, transform_indices = @transform_1, window_bounds = array<i64: 36, 128>}, {pipeline_mode = #tpu.pipeline_mode<synchronous>, transform_indices = @transform_2, window_bounds = array<i64: 1, 128>}, {pipeline_mode = #tpu.pipeline_mode<synchronous>, transform_indices = @transform_3, window_bounds = array<i64: 1, 128>}, {pipeline_mode = #tpu.pipeline_mode<synchronous>, transform_indices = @transform_4, window_bounds = array<i64: 512, 128>}]} {
    %c0_i32 = arith.constant 0 : i32
    %0 = arith.cmpi eq, %arg0, %c0_i32 : i32
    %1 = arith.extui %0 : i1 to i32
    %c0_i32_0 = arith.constant 0 : i32
    %2 = arith.cmpi ne, %1, %c0_i32_0 : i32
    scf.if %2 {
      %cst_17 = arith.constant 0.000000e+00 : f32
      %24 = vector.broadcast %cst_17 : f32 to vector<1x128xf32>
      %c0_18 = arith.constant 0 : index
      %c0_19 = arith.constant 0 : index
      %25 = vector.load %arg6[%c0_18, %c0_19] : memref<1x128xf32, #tpu.memory_space<vmem>>, vector<1x128xf32>
      tpu.vector_store %arg6[%c0_18, %c0_19], %24 {strides = array<i32>} : memref<1x128xf32, #tpu.memory_space<vmem>>, vector<1x128xf32>,
      %cst_20 = arith.constant 0.000000e+00 : f32
      %26 = vector.broadcast %cst_20 : f32 to vector<1x128xf32>
      %c0_21 = arith.constant 0 : index
      %c0_22 = arith.constant 0 : index
      %27 = vector.load %arg7[%c0_21, %c0_22] : memref<1x128xf32, #tpu.memory_space<vmem>>, vector<1x128xf32>
      tpu.vector_store %arg7[%c0_21, %c0_22], %26 {strides = array<i32>} : memref<1x128xf32, #tpu.memory_space<vmem>>, vector<1x128xf32>,
    } else {
    }
    %c0 = arith.constant 0 : index
    %c0_1 = arith.constant 0 : index
    %3 = vector.load %arg1[%c0, %c0_1] : memref<512x36xf32, #tpu.memory_space<vmem>>, vector<512x36xf32>
    %c0_2 = arith.constant 0 : index
    %c0_3 = arith.constant 0 : index
    %4 = vector.load %arg2[%c0_2, %c0_3] : memref<36x128xf32, #tpu.memory_space<vmem>>, vector<36x128xf32>
    %cst = arith.constant dense<0.000000e+00> : vector<512x128xf32>
    %5 = tpu.matmul %3, %4, %cst {dimension_numbers = #tpu.dot_dimension_numbers<[1], [0], [0], [1], [0, 0, 1, 1], [], []>} : vector<512x36xf32>, vector<36x128xf32>, vector<512x128xf32> -> vector<512x128xf32>
    %c512_i32 = arith.constant 512 : i32
    %6 = arith.muli %arg0, %c512_i32 : i32
    %7 = tpu.assume_multiple %6, 512 : i32
    %8 = arith.index_cast %7 : i32 to index
    %c0_4 = arith.constant 0 : index
    %9 = vector.load %arg5[%8, %c0_4] : memref<512x128xf32, #tpu.memory_space<vmem>>, vector<512x128xf32>
    tpu.vector_store %arg5[%8, %c0_4], %5 {strides = array<i32>} : memref<512x128xf32, #tpu.memory_space<vmem>>, vector<512x128xf32>,
    %c0_5 = arith.constant 0 : index
    %c0_6 = arith.constant 0 : index
    %10 = vector.load %arg6[%c0_5, %c0_6] : memref<1x128xf32, #tpu.memory_space<vmem>>, vector<1x128xf32>
    %cst_7 = arith.constant dense<0.000000e+00> : vector<128xf32>
    %11 = vector.multi_reduction <add>, %5, %cst_7 [0] : vector<512x128xf32> to vector<128xf32>
    %12 = vector.shape_cast %11 : vector<128xf32> to vector<1x128xf32>
    %13 = arith.addf %10, %12 : vector<1x128xf32>
    %c0_8 = arith.constant 0 : index
    %c0_9 = arith.constant 0 : index
    %14 = vector.load %arg6[%c0_8, %c0_9] : memref<1x128xf32, #tpu.memory_space<vmem>>, vector<1x128xf32>
    tpu.vector_store %arg6[%c0_8, %c0_9], %13 {strides = array<i32>} : memref<1x128xf32, #tpu.memory_space<vmem>>, vector<1x128xf32>,
    %c0_10 = arith.constant 0 : index
    %c0_11 = arith.constant 0 : index
    %15 = vector.load %arg7[%c0_10, %c0_11] : memref<1x128xf32, #tpu.memory_space<vmem>>, vector<1x128xf32>
    %16 = arith.mulf %5, %5 : vector<512x128xf32>
    %cst_12 = arith.constant dense<0.000000e+00> : vector<128xf32>
    %17 = vector.multi_reduction <add>, %16, %cst_12 [0] : vector<512x128xf32> to vector<128xf32>
    %18 = vector.shape_cast %17 : vector<128xf32> to vector<1x128xf32>
    %19 = arith.addf %15, %18 : vector<1x128xf32>
    %c0_13 = arith.constant 0 : index
    %c0_14 = arith.constant 0 : index
    %20 = vector.load %arg7[%c0_13, %c0_14] : memref<1x128xf32, #tpu.memory_space<vmem>>, vector<1x128xf32>
    tpu.vector_store %arg7[%c0_13, %c0_14], %19 {strides = array<i32>} : memref<1x128xf32, #tpu.memory_space<vmem>>, vector<1x128xf32>,
    %c0_i32_15 = arith.constant 0 : i32
    %21 = arith.cmpi eq, %arg0, %c0_i32_15 : i32
    %22 = arith.extui %21 : i1 to i32
    %c0_i32_16 = arith.constant 0 : i32
    %23 = arith.cmpi ne, %22, %c0_i32_16 : i32
    scf.if %23 {
      %c0_17 = arith.constant 0 : index
      %c0_18 = arith.constant 0 : index
      %24 = vector.load %arg6[%c0_17, %c0_18] : memref<1x128xf32, #tpu.memory_space<vmem>>, vector<1x128xf32>
      %cst_19 = arith.constant 0.001953125 : f32
      %25 = vector.broadcast %cst_19 : f32 to vector<1x128xf32>
      %26 = arith.mulf %24, %25 : vector<1x128xf32>
      %c0_20 = arith.constant 0 : index
      %c0_21 = arith.constant 0 : index
      %27 = vector.load %arg7[%c0_20, %c0_21] : memref<1x128xf32, #tpu.memory_space<vmem>>, vector<1x128xf32>
      %cst_22 = arith.constant 0.001953125 : f32
      %28 = vector.broadcast %cst_22 : f32 to vector<1x128xf32>
      %29 = arith.mulf %27, %28 : vector<1x128xf32>
      %30 = arith.mulf %26, %26 : vector<1x128xf32>
      %31 = arith.subf %29, %30 : vector<1x128xf32>
      %c0_23 = arith.constant 0 : index
      %c0_24 = arith.constant 0 : index
      %32 = vector.load %arg3[%c0_23, %c0_24] : memref<1x128xf32, #tpu.memory_space<vmem>>, vector<1x128xf32>
      %cst_25 = arith.constant 1.000000e-03 : f32
      %33 = vector.broadcast %cst_25 : f32 to vector<1x128xf32>
      %34 = arith.addf %31, %33 : vector<1x128xf32>
      %35 = math.rsqrt %34 : vector<1x128xf32>
      %36 = arith.mulf %32, %35 : vector<1x128xf32>
      %c0_26 = arith.constant 0 : index
      %c0_27 = arith.constant 0 : index
      %37 = vector.load %arg4[%c0_26, %c0_27] : memref<1x128xf32, #tpu.memory_space<vmem>>, vector<1x128xf32>
      %38 = arith.mulf %26, %36 : vector<1x128xf32>
      %39 = arith.subf %37, %38 : vector<1x128xf32>
      %c0_28 = arith.constant 0 : index
      %c0_29 = arith.constant 0 : index
      %40 = vector.load %arg5[%c0_28, %c0_29] : memref<512x128xf32, #tpu.memory_space<vmem>>, vector<512x128xf32>
      %41 = vector.broadcast %36 : vector<1x128xf32> to vector<512x128xf32>
      %42 = arith.mulf %40, %41 : vector<512x128xf32>
      %43 = vector.broadcast %39 : vector<1x128xf32> to vector<512x128xf32>
      %44 = arith.addf %42, %43 : vector<512x128xf32>
      %c0_30 = arith.constant 0 : index
      %c0_31 = arith.constant 0 : index
      %45 = vector.load %arg5[%c0_30, %c0_31] : memref<512x128xf32, #tpu.memory_space<vmem>>, vector<512x128xf32>
      tpu.vector_store %arg5[%c0_30, %c0_31], %44 {strides = array<i32>} : memref<512x128xf32, #tpu.memory_space<vmem>>, vector<512x128xf32>,
    } else {
    }
    return
  }
  func.func @transform_0(%arg0: i32) -> (i32, i32) {
    %c0_i32 = arith.constant 0 : i32
    %c0_i32_0 = arith.constant 0 : i32
    return %arg0, %c0_i32 : i32, i32
  }
  func.func @transform_1(%arg0: i32) -> (i32, i32) {
    %c0_i32 = arith.constant 0 : i32
    %c0_i32_0 = arith.constant 0 : i32
    %c0_i32_1 = arith.constant 0 : i32
    return %c0_i32, %c0_i32_0 : i32, i32
  }
  func.func @transform_2(%arg0: i32) -> (i32, i32) {
    %c0_i32 = arith.constant 0 : i32
    %c0_i32_0 = arith.constant 0 : i32
    %c0_i32_1 = arith.constant 0 : i32
    return %c0_i32, %c0_i32_0 : i32, i32
  }
  func.func @transform_3(%arg0: i32) -> (i32, i32) {
    %c0_i32 = arith.constant 0 : i32
    %c0_i32_0 = arith.constant 0 : i32
    %c0_i32_1 = arith.constant 0 : i32
    return %c0_i32, %c0_i32_0 : i32, i32
  }
  func.func @transform_4(%arg0: i32) -> (i32, i32) {
    %c0_i32 = arith.constant 0 : i32
    %c0_i32_0 = arith.constant 0 : i32
    %c0_i32_1 = arith.constant 0 : i32
    return %c0_i32, %c0_i32_0 : i32, i32
  }
}

</mosaic_0001>

<llo_original>
// kernel: tpu_custom_call.1
$region0: #{tpu_custom_call.1}
  #allocation0 [shape = 'u32[]', space=smem, size = 0x4, offset = 0x4, fixed_abs, tag = 'smem constant byte address 0x4 - core index']
  #allocation1 [shape = 'u32[144,128]{1,0:T(1,128)}', space=vmem, size = 0x12000, scoped, tag = 'internal scratch']
  #allocation2 [shape = 'f32[1,128]{1,0:T(1,128)}', space=vmem, size = 0x200, scoped, tag = 'scratch operand']
  #allocation3 [shape = 'f32[1,128]{1,0:T(1,128)}', space=vmem, size = 0x200, scoped, tag = 'scratch operand']
  %s0 = inlined_call_operand.vmem [shape: f32[512,36], index: 0, kind: input, shape index: {}]
  %s1 = inlined_call_operand.vmem [shape: f32[36,128], index: 1, kind: input, shape index: {}]
  %s2 = inlined_call_operand.vmem [shape: f32[1,128], index: 2, kind: input, shape index: {}]
  %s3 = inlined_call_operand.vmem [shape: f32[1,128], index: 3, kind: input, shape index: {}]
  %s4 = inlined_call_operand.hbm [shape: f32[512,128], index: 4, kind: output, shape index: {}]
  %s5 = sld [smem:[#allocation0]]
  $region34: #{tpu_custom_call.1} parent=0
    _
  %s7 = ssub.s32 1, %s5
  %s8 = scalar_select 0, %s7, %s5
  $region1: #{tpu_custom_call.1} parent=0
    #allocation4 [shape = 'u8[262144]{0}', space=vmem, size = 0x40000, scoped, tag = 'output window, operand 0, single buffered']
    #allocation5 [shape = 's32[1]{0}', space=sflag, size = 0x4, scoped, tag = 'scoped memory for tpu_custom_call.1']
    %9 = vsyncpa [#allocation5], 0
    // Predicated region
    $region2: #{tpu_custom_call.1} parent=1 // pred_check
      _
    $region3: #{tpu_custom_call.1} parent=1 // pred_check_branch
      %11 = sbr.rel (0) target = $region5
    $region4: #{tpu_custom_call.1} parent=1 // pred_region
      _
    $region5: #{tpu_custom_call.1} parent=1 // pred_fallthru
      _
    // Predicated region
    $region6: #{tpu_custom_call.1} parent=1 // pred_check
      _
    $region7: #{tpu_custom_call.1} parent=1 // pred_check_branch
      %13 = sbr.rel (0) target = $region9
    $region8: #{tpu_custom_call.1} parent=1 // pred_region
      _
    $region9: #{tpu_custom_call.1} parent=1 // pred_fallthru
      _
    // Predicated region
    $region10: #{tpu_custom_call.1} parent=1 // pred_check
      _
    $region11: #{tpu_custom_call.1} parent=1 // pred_check_branch
      %15 = sbr.rel (0) target = $region13
    $region12: #{tpu_custom_call.1} parent=1 // pred_region
      _
    $region13: #{tpu_custom_call.1} parent=1 // pred_fallthru
      _
    // Predicated region
    $region14: #{tpu_custom_call.1} parent=1 // pred_check
      _
    $region15: #{tpu_custom_call.1} parent=1 // pred_check_branch
      %17 = sbr.rel (0) target = $region17
    $region16: #{tpu_custom_call.1} parent=1 // pred_region
      _
    $region17: #{tpu_custom_call.1} parent=1 // pred_fallthru
      _
    %p18 = scmp.eq.s32.totalorder 0, 0
    // Predicated region
    $region18: #{tpu_custom_call.1} parent=1 // pred_check
      %p19 = pneg %p18
    $region19: #{tpu_custom_call.1} parent=1 // pred_check_branch
      %21 = sbr.rel (%p19) target = $region21
    $region20: #{tpu_custom_call.1} parent=1 // pred_region
      %22 = vst [vmem:[#allocation2] sm:$0x1] 0.0
      %23 = vst [vmem:[#allocation3] sm:$0x1] 0.0
    $region21: #{tpu_custom_call.1} parent=1 // pred_fallthru
      _
    %v24 = vld [vmem:[%s0] sm:$0xff]
    %v25 = vld [vmem:[%s0 + $0x8] sm:$0xff]
    %v26 = vld [vmem:[%s0 + $0x10] sm:$0xff]
    %v27 = vld [vmem:[%s0 + $0x18] sm:$0xff]
    %v28 = vld [vmem:[%s0 + $0x20] sm:$0xff]
    %v29 = vld [vmem:[%s0 + $0x28] sm:$0xff]
    %v30 = vld [vmem:[%s0 + $0x30] sm:$0xff]
    %v31 = vld [vmem:[%s0 + $0x38] sm:$0xff]
    %v32 = vld [vmem:[%s0 + $0x40] sm:$0xff]
    %v33 = vld [vmem:[%s0 + $0x48] sm:$0xff]
    %v34 = vld [vmem:[%s0 + $0x50] sm:$0xff]
    %v35 = vld [vmem:[%s0 + $0x58] sm:$0xff]
    %v36 = vld [vmem:[%s0 + $0x60] sm:$0xff]
    %v37 = vld [vmem:[%s0 + $0x68] sm:$0xff]
    %v38 = vld [vmem:[%s0 + $0x70] sm:$0xff]
    %v39 = vld [vmem:[%s0 + $0x78] sm:$0xff]
    %v40 = vld [vmem:[%s0 + $0x80] sm:$0xff]
    %v41 = vld [vmem:[%s0 + $0x88] sm:$0xff]
    %v42 = vld [vmem:[%s0 + $0x90] sm:$0xff]
    %v43 = vld [vmem:[%s0 + $0x98] sm:$0xff]
    %v44 = vld [vmem:[%s0 + $0xa0] sm:$0xff]
    %v45 = vld [vmem:[%s0 + $0xa8] sm:$0xff]
    %v46 = vld [vmem:[%s0 + $0xb0] sm:$0xff]
    %v47 = vld [vmem:[%s0 + $0xb8] sm:$0xff]
    %v48 = vld [vmem:[%s0 + $0xc0] sm:$0xff]
    %v49 = vld [vmem:[%s0 + $0xc8] sm:$0xff]
    %v50 = vld [vmem:[%s0 + $0xd0] sm:$0xff]
    %v51 = vld [vmem:[%s0 + $0xd8] sm:$0xff]
    %v52 = vld [vmem:[%s0 + $0xe0] sm:$0xff]
    %v53 = vld [vmem:[%s0 + $0xe8] sm:$0xff]
    %v54 = vld [vmem:[%s0 + $0xf0] sm:$0xff]
    %v55 = vld [vmem:[%s0 + $0xf8] sm:$0xff]
    %v56 = vld [vmem:[%s0 + $0x100] sm:$0xff]
    %v57 = vld [vmem:[%s0 + $0x108] sm:$0xff]
    %v58 = vld [vmem:[%s0 + $0x110] sm:$0xff]
    %v59 = vld [vmem:[%s0 + $0x118] sm:$0xff]
    %v60 = vld [vmem:[%s0 + $0x120] sm:$0xff]
    %v61 = vld [vmem:[%s0 + $0x128] sm:$0xff]
    %v62 = vld [vmem:[%s0 + $0x130] sm:$0xff]
    %v63 = vld [vmem:[%s0 + $0x138] sm:$0xff]
    %v64 = vld [vmem:[%s0 + $0x140] sm:$0xff]
    %v65 = vld [vmem:[%s0 + $0x148] sm:$0xff]
    %v66 = vld [vmem:[%s0 + $0x150] sm:$0xff]
    %v67 = vld [vmem:[%s0 + $0x158] sm:$0xff]
    %v68 = vld [vmem:[%s0 + $0x160] sm:$0xff]
    %v69 = vld [vmem:[%s0 + $0x168] sm:$0xff]
    %v70 = vld [vmem:[%s0 + $0x170] sm:$0xff]
    %v71 = vld [vmem:[%s0 + $0x178] sm:$0xff]
    %v72 = vld [vmem:[%s0 + $0x180] sm:$0xff]
    %v73 = vld [vmem:[%s0 + $0x188] sm:$0xff]
    %v74 = vld [vmem:[%s0 + $0x190] sm:$0xff]
    %v75 = vld [vmem:[%s0 + $0x198] sm:$0xff]
    %v76 = vld [vmem:[%s0 + $0x1a0] sm:$0xff]
    %v77 = vld [vmem:[%s0 + $0x1a8] sm:$0xff]
    %v78 = vld [vmem:[%s0 + $0x1b0] sm:$0xff]
    %v79 = vld [vmem:[%s0 + $0x1b8] sm:$0xff]
    %v80 = vld [vmem:[%s0 + $0x1c0] sm:$0xff]
    %v81 = vld [vmem:[%s0 + $0x1c8] sm:$0xff]
    %v82 = vld [vmem:[%s0 + $0x1d0] sm:$0xff]
    %v83 = vld [vmem:[%s0 + $0x1d8] sm:$0xff]
    %v84 = vld [vmem:[%s0 + $0x1e0] sm:$0xff]
    %v85 = vld [vmem:[%s0 + $0x1e8] sm:$0xff]
    %v86 = vld [vmem:[%s0 + $0x1f0] sm:$0xff]
    %v87 = vld [vmem:[%s0 + $0x1f8] sm:$0xff]
    %v88 = vld [vmem:[%s1] sm:$0xff]
    %v89 = vld [vmem:[%s1 + $0x8] sm:$0xff]
    %v90 = vld [vmem:[%s1 + $0x10] sm:$0xff]
    %v91 = vld [vmem:[%s1 + $0x18] sm:$0xff]
    %v92 = vld [vmem:[%s1 + $0x20] sm:$0xf]
    %vm93 = vcmask 293888
    %v95 = vsel %vm93, %v24, 0
    %v98 = vsel %vm93, %v25, 0
    %v101 = vsel %vm93, %v26, 0
    %v104 = vsel %vm93, %v27, 0
    %v107 = vsel %vm93, %v28, 0
    %v110 = vsel %vm93, %v29, 0
    %v113 = vsel %vm93, %v30, 0
    %v116 = vsel %vm93, %v31, 0
    %v119 = vsel %vm93, %v32, 0
    %v122 = vsel %vm93, %v33, 0
    %v125 = vsel %vm93, %v34, 0
    %v128 = vsel %vm93, %v35, 0
    %v131 = vsel %vm93, %v36, 0
    %v134 = vsel %vm93, %v37, 0
    %v137 = vsel %vm93, %v38, 0
    %v140 = vsel %vm93, %v39, 0
    %v143 = vsel %vm93, %v40, 0
    %v146 = vsel %vm93, %v41, 0
    %v149 = vsel %vm93, %v42, 0
    %v152 = vsel %vm93, %v43, 0
    %v155 = vsel %vm93, %v44, 0
    %v158 = vsel %vm93, %v45, 0
    %v161 = vsel %vm93, %v46, 0
    %v164 = vsel %vm93, %v47, 0
    %v167 = vsel %vm93, %v48, 0
    %v170 = vsel %vm93, %v49, 0
    %v173 = vsel %vm93, %v50, 0
    %v176 = vsel %vm93, %v51, 0
    %v179 = vsel %vm93, %v52, 0
    %v182 = vsel %vm93, %v53, 0
    %v185 = vsel %vm93, %v54, 0
    %v188 = vsel %vm93, %v55, 0
    %v191 = vsel %vm93, %v56, 0
    %v194 = vsel %vm93, %v57, 0
    %v197 = vsel %vm93, %v58, 0
    %v200 = vsel %vm93, %v59, 0
    %v203 = vsel %vm93, %v60, 0
    %v206 = vsel %vm93, %v61, 0
    %v209 = vsel %vm93, %v62, 0
    %v212 = vsel %vm93, %v63, 0
    %v215 = vsel %vm93, %v64, 0
    %v218 = vsel %vm93, %v65, 0
    %v221 = vsel %vm93, %v66, 0
    %v224 = vsel %vm93, %v67, 0
    %v227 = vsel %vm93, %v68, 0
    %v230 = vsel %vm93, %v69, 0
    %v233 = vsel %vm93, %v70, 0
    %v236 = vsel %vm93, %v71, 0
    %v239 = vsel %vm93, %v72, 0
    %v242 = vsel %vm93, %v73, 0
    %v245 = vsel %vm93, %v74, 0
    %v248 = vsel %vm93, %v75, 0
    %v251 = vsel %vm93, %v76, 0
    %v254 = vsel %vm93, %v77, 0
    %v257 = vsel %vm93, %v78, 0
    %v260 = vsel %vm93, %v79, 0
    %v263 = vsel %vm93, %v80, 0
    %v266 = vsel %vm93, %v81, 0
    %v269 = vsel %vm93, %v82, 0
    %v272 = vsel %vm93, %v83, 0
    %v275 = vsel %vm93, %v84, 0
    %v278 = vsel %vm93, %v85, 0
    %v281 = vsel %vm93, %v86, 0
    %v284 = vsel %vm93, %v87, 0
    %vm286 = vcmask 1043456
    %v288 = vsel %vm286, %v92, 0
    %290 = vmatprep.subr.mxu0 0.0
    %291 = vmatpush1.msra.mxu0 0.0
    %292 = vmatprep.subr.mxu0 0.0
    %293 = vmatpush1.msra.mxu0 0.0
    %294 = vmatprep.subr.mxu0 0.0
    %295 = vmatpush1.msra.mxu0 0.0
    %296 = vmatprep.subr.mxu0 0.0
    %297 = vmatpush1.msra.mxu0 0.0
    %298 = vmatprep.subr.mxu0 0.0
    %299 = vmatpush1.msra.mxu0 0.0
    %300 = vmatprep.subr.mxu0 0.0
    %301 = vmatpush1.msra.mxu0 0.0
    %302 = vmatprep.subr.mxu0 0.0
    %303 = vmatpush1.msra.mxu0 0.0
    %304 = vmatprep.subr.mxu0 0.0
    %305 = vmatpush1.msra.mxu0 0.0
    %306 = vmatprep.subr.mxu0 0.0
    %307 = vmatpush1.msra.mxu0 0.0
    %308 = vmatprep.subr.mxu0 0.0
    %309 = vmatpush1.msra.mxu0 0.0
    %310 = vmatprep.subr.mxu0 0.0
    %311 = vmatpush1.msra.mxu0 0.0
    %312 = vmatprep.subr.mxu0 0.0
    %313 = vmatpush1.msra.mxu0 %v288
    %314 = vmatprep.subr.mxu0 0.0
    %315 = vmatpush1.msra.mxu0 %v91
    %316 = vmatprep.subr.mxu0 0.0
    %317 = vmatpush1.msra.mxu0 %v90
    %318 = vmatprep.subr.mxu0 0.0
    %319 = vmatpush1.msra.mxu0 %v89
    %320 = vmatprep.subr.mxu0 0.0
    %321 = vmatpush1.msra.mxu0 %v88
    %322 = vmatprep.subr.mxu0 0.0
    %323 = vmatpush2.msra.mxu0 0.0
    %324 = vmatprep.subr.mxu0 0.0
    %325 = vmatpush2.msra.mxu0 0.0
    %326 = vmatprep.subr.mxu0 0.0
    %327 = vmatpush2.msra.mxu0 0.0
    %328 = vmatprep.subr.mxu0 0.0
    %329 = vmatpush2.msra.mxu0 0.0
    %330 = vmatprep.subr.mxu0 0.0
    %331 = vmatpush2.msra.mxu0 0.0
    %332 = vmatprep.subr.mxu0 0.0
    %333 = vmatpush2.msra.mxu0 0.0
    %334 = vmatprep.subr.mxu0 0.0
    %335 = vmatpush2.msra.mxu0 0.0
    %336 = vmatprep.subr.mxu0 0.0
    %337 = vmatpush2.msra.mxu0 0.0
    %338 = vmatprep.subr.mxu0 0.0
    %339 = vmatpush2.msra.mxu0 0.0
    %340 = vmatprep.subr.mxu0 0.0
    %341 = vmatpush2.msra.mxu0 0.0
    %342 = vmatprep.subr.mxu0 0.0
    %343 = vmatpush2.msra.mxu0 0.0
    %344 = vmatprep.subr.mxu0 0.0
    %345 = vmatpush2.msra.mxu0 0.0
    %346 = vmatprep.subr.mxu0 0.0
    %347 = vmatpush2.msra.mxu0 0.0
    %348 = vmatprep.subr.mxu0 0.0
    %349 = vmatpush2.msra.mxu0 0.0
    %350 = vmatprep.subr.mxu0 0.0
    %351 = vmatpush2.msra.mxu0 0.0
    %352 = vmatprep.subr.mxu0 0.0
    %353 = vmatpush2.msra.mxu0 0.0
    %354 = vmatprep.mubr.f32.mxu0 0.0
    %355 = vmatmul.mubr.f32.gmra.mxu0 %v95
    %v356 = vpop.f32.mrf.mxu0
    %v357 = vadd.f32 0.0, %v356
    %v358 = vpop.f32.mrf.mxu0
    %359 = vmatprep.mubr.f32.mxu0 0.0
    %360 = vmatmul.mubr.f32.gmra.mxu0 %v98
    %v361 = vpop.f32.mrf.mxu0
    %v362 = vadd.f32 0.0, %v361
    %v363 = vpop.f32.mrf.mxu0
    %364 = vmatprep.mubr.f32.mxu0 0.0
    %365 = vmatmul.mubr.f32.gmra.mxu0 %v101
    %v366 = vpop.f32.mrf.mxu0
    %v367 = vadd.f32 0.0, %v366
    %v368 = vpop.f32.mrf.mxu0
    %369 = vmatprep.mubr.f32.mxu0 0.0
    %370 = vmatmul.mubr.f32.gmra.mxu0 %v104
    %v371 = vpop.f32.mrf.mxu0
    %v372 = vadd.f32 0.0, %v371
    %v373 = vpop.f32.mrf.mxu0
    %374 = vmatprep.mubr.f32.mxu0 0.0
    %375 = vmatmul.mubr.f32.gmra.mxu0 %v107
    %v376 = vpop.f32.mrf.mxu0
    %v377 = vadd.f32 0.0, %v376
    %v378 = vpop.f32.mrf.mxu0
    %379 = vmatprep.mubr.f32.mxu0 0.0
    %380 = vmatmul.mubr.f32.gmra.mxu0 %v110
    %v381 = vpop.f32.mrf.mxu0
    %v382 = vadd.f32 0.0, %v381
    %v383 = vpop.f32.mrf.mxu0
    %384 = vmatprep.mubr.f32.mxu0 0.0
    %385 = vmatmul.mubr.f32.gmra.mxu0 %v113
    %v386 = vpop.f32.mrf.mxu0
    %v387 = vadd.f32 0.0, %v386
    %v388 = vpop.f32.mrf.mxu0
    %389 = vmatprep.mubr.f32.mxu0 0.0
    %390 = vmatmul.mubr.f32.gmra.mxu0 %v116
    %v391 = vpop.f32.mrf.mxu0
    %v392 = vadd.f32 0.0, %v391
    %v393 = vpop.f32.mrf.mxu0
    %394 = vmatprep.mubr.f32.mxu0 0.0
    %395 = vmatmul.mubr.f32.gmra.mxu0 %v119
    %v396 = vpop.f32.mrf.mxu0
    %v397 = vadd.f32 0.0, %v396
    %v398 = vpop.f32.mrf.mxu0
    %399 = vmatprep.mubr.f32.mxu0 0.0
    %400 = vmatmul.mubr.f32.gmra.mxu0 %v122
    %v401 = vpop.f32.mrf.mxu0
    %v402 = vadd.f32 0.0, %v401
    %v403 = vpop.f32.mrf.mxu0
    %404 = vmatprep.mubr.f32.mxu0 0.0
    %405 = vmatmul.mubr.f32.gmra.mxu0 %v125
    %v406 = vpop.f32.mrf.mxu0
    %v407 = vadd.f32 0.0, %v406
    %v408 = vpop.f32.mrf.mxu0
    %409 = vmatprep.mubr.f32.mxu0 0.0
    %410 = vmatmul.mubr.f32.gmra.mxu0 %v128
    %v411 = vpop.f32.mrf.mxu0
    %v412 = vadd.f32 0.0, %v411
    %v413 = vpop.f32.mrf.mxu0
    %414 = vmatprep.mubr.f32.mxu0 0.0
    %415 = vmatmul.mubr.f32.gmra.mxu0 %v131
    %v416 = vpop.f32.mrf.mxu0
    %v417 = vadd.f32 0.0, %v416
    %v418 = vpop.f32.mrf.mxu0
    %419 = vmatprep.mubr.f32.mxu0 0.0
    %420 = vmatmul.mubr.f32.gmra.mxu0 %v134
    %v421 = vpop.f32.mrf.mxu0
    %v422 = vadd.f32 0.0, %v421
    %v423 = vpop.f32.mrf.mxu0
    %424 = vmatprep.mubr.f32.mxu0 0.0
    %425 = vmatmul.mubr.f32.gmra.mxu0 %v137
    %v426 = vpop.f32.mrf.mxu0
    %v427 = vadd.f32 0.0, %v426
    %v428 = vpop.f32.mrf.mxu0
    %429 = vmatprep.mubr.f32.mxu0 0.0
    %430 = vmatmul.mubr.f32.gmra.mxu0 %v140
    %v431 = vpop.f32.mrf.mxu0
    %v432 = vadd.f32 0.0, %v431
    %v433 = vpop.f32.mrf.mxu0
    %434 = vmatprep.mubr.f32.mxu0 0.0
    %435 = vmatmul.mubr.f32.gmra.mxu0 %v143
    %v436 = vpop.f32.mrf.mxu0
    %v437 = vadd.f32 0.0, %v436
    %v438 = vpop.f32.mrf.mxu0
    %439 = vmatprep.mubr.f32.mxu0 0.0
    %440 = vmatmul.mubr.f32.gmra.mxu0 %v146
    %v441 = vpop.f32.mrf.mxu0
    %v442 = vadd.f32 0.0, %v441
    %v443 = vpop.f32.mrf.mxu0
    %444 = vmatprep.mubr.f32.mxu0 0.0
    %445 = vmatmul.mubr.f32.gmra.mxu0 %v149
    %v446 = vpop.f32.mrf.mxu0
    %v447 = vadd.f32 0.0, %v446
    %v448 = vpop.f32.mrf.mxu0
    %449 = vmatprep.mubr.f32.mxu0 0.0
    %450 = vmatmul.mubr.f32.gmra.mxu0 %v152
    %v451 = vpop.f32.mrf.mxu0
    %v452 = vadd.f32 0.0, %v451
    %v453 = vpop.f32.mrf.mxu0
    %454 = vmatprep.mubr.f32.mxu0 0.0
    %455 = vmatmul.mubr.f32.gmra.mxu0 %v155
    %v456 = vpop.f32.mrf.mxu0
    %v457 = vadd.f32 0.0, %v456
    %v458 = vpop.f32.mrf.mxu0
    %459 = vmatprep.mubr.f32.mxu0 0.0
    %460 = vmatmul.mubr.f32.gmra.mxu0 %v158
    %v461 = vpop.f32.mrf.mxu0
    %v462 = vadd.f32 0.0, %v461
    %v463 = vpop.f32.mrf.mxu0
    %464 = vmatprep.mubr.f32.mxu0 0.0
    %465 = vmatmul.mubr.f32.gmra.mxu0 %v161
    %v466 = vpop.f32.mrf.mxu0
    %v467 = vadd.f32 0.0, %v466
    %v468 = vpop.f32.mrf.mxu0
    %469 = vmatprep.mubr.f32.mxu0 0.0
    %470 = vmatmul.mubr.f32.gmra.mxu0 %v164
    %v471 = vpop.f32.mrf.mxu0
    %v472 = vadd.f32 0.0, %v471
    %v473 = vpop.f32.mrf.mxu0
    %474 = vmatprep.mubr.f32.mxu0 0.0
    %475 = vmatmul.mubr.f32.gmra.mxu0 %v167
    %v476 = vpop.f32.mrf.mxu0
    %v477 = vadd.f32 0.0, %v476
    %v478 = vpop.f32.mrf.mxu0
    %479 = vmatprep.mubr.f32.mxu0 0.0
    %480 = vmatmul.mubr.f32.gmra.mxu0 %v170
    %v481 = vpop.f32.mrf.mxu0
    %v482 = vadd.f32 0.0, %v481
    %v483 = vpop.f32.mrf.mxu0
    %484 = vmatprep.mubr.f32.mxu0 0.0
    %485 = vmatmul.mubr.f32.gmra.mxu0 %v173
    %v486 = vpop.f32.mrf.mxu0
    %v487 = vadd.f32 0.0, %v486
    %v488 = vpop.f32.mrf.mxu0
    %489 = vmatprep.mubr.f32.mxu0 0.0
    %490 = vmatmul.mubr.f32.gmra.mxu0 %v176
    %v491 = vpop.f32.mrf.mxu0
    %v492 = vadd.f32 0.0, %v491
    %v493 = vpop.f32.mrf.mxu0
    %494 = vmatprep.mubr.f32.mxu0 0.0
    %495 = vmatmul.mubr.f32.gmra.mxu0 %v179
    %v496 = vpop.f32.mrf.mxu0
    %v497 = vadd.f32 0.0, %v496
    %v498 = vpop.f32.mrf.mxu0
    %499 = vmatprep.mubr.f32.mxu0 0.0
    %500 = vmatmul.mubr.f32.gmra.mxu0 %v182
    %v501 = vpop.f32.mrf.mxu0
    %v502 = vadd.f32 0.0, %v501
    %v503 = vpop.f32.mrf.mxu0
    %504 = vmatprep.mubr.f32.mxu0 0.0
    %505 = vmatmul.mubr.f32.gmra.mxu0 %v185
    %v506 = vpop.f32.mrf.mxu0
    %v507 = vadd.f32 0.0, %v506
    %v508 = vpop.f32.mrf.mxu0
    %509 = vmatprep.mubr.f32.mxu0 0.0
    %510 = vmatmul.mubr.f32.gmra.mxu0 %v188
    %v511 = vpop.f32.mrf.mxu0
    %v512 = vadd.f32 0.0, %v511
    %v513 = vpop.f32.mrf.mxu0
    %514 = vmatprep.mubr.f32.mxu0 0.0
    %515 = vmatmul.mubr.f32.gmra.mxu0 %v191
    %v516 = vpop.f32.mrf.mxu0
    %v517 = vadd.f32 0.0, %v516
    %v518 = vpop.f32.mrf.mxu0
    %519 = vmatprep.mubr.f32.mxu0 0.0
    %520 = vmatmul.mubr.f32.gmra.mxu0 %v194
    %v521 = vpop.f32.mrf.mxu0
    %v522 = vadd.f32 0.0, %v521
    %v523 = vpop.f32.mrf.mxu0
    %524 = vmatprep.mubr.f32.mxu0 0.0
    %525 = vmatmul.mubr.f32.gmra.mxu0 %v197
    %v526 = vpop.f32.mrf.mxu0
    %v527 = vadd.f32 0.0, %v526
    %v528 = vpop.f32.mrf.mxu0
    %529 = vmatprep.mubr.f32.mxu0 0.0
    %530 = vmatmul.mubr.f32.gmra.mxu0 %v200
    %v531 = vpop.f32.mrf.mxu0
    %v532 = vadd.f32 0.0, %v531
    %v533 = vpop.f32.mrf.mxu0
    %534 = vmatprep.mubr.f32.mxu0 0.0
    %535 = vmatmul.mubr.f32.gmra.mxu0 %v203
    %v536 = vpop.f32.mrf.mxu0
    %v537 = vadd.f32 0.0, %v536
    %v538 = vpop.f32.mrf.mxu0
    %539 = vmatprep.mubr.f32.mxu0 0.0
    %540 = vmatmul.mubr.f32.gmra.mxu0 %v206
    %v541 = vpop.f32.mrf.mxu0
    %v542 = vadd.f32 0.0, %v541
    %v543 = vpop.f32.mrf.mxu0
    %544 = vmatprep.mubr.f32.mxu0 0.0
    %545 = vmatmul.mubr.f32.gmra.mxu0 %v209
    %v546 = vpop.f32.mrf.mxu0
    %v547 = vadd.f32 0.0, %v546
    %v548 = vpop.f32.mrf.mxu0
    %549 = vmatprep.mubr.f32.mxu0 0.0
    %550 = vmatmul.mubr.f32.gmra.mxu0 %v212
    %v551 = vpop.f32.mrf.mxu0
    %v552 = vadd.f32 0.0, %v551
    %v553 = vpop.f32.mrf.mxu0
    %554 = vmatprep.mubr.f32.mxu0 0.0
    %555 = vmatmul.mubr.f32.gmra.mxu0 %v215
    %v556 = vpop.f32.mrf.mxu0
    %v557 = vadd.f32 0.0, %v556
    %v558 = vpop.f32.mrf.mxu0
    %559 = vmatprep.mubr.f32.mxu0 0.0
    %560 = vmatmul.mubr.f32.gmra.mxu0 %v218
    %v561 = vpop.f32.mrf.mxu0
    %v562 = vadd.f32 0.0, %v561
    %v563 = vpop.f32.mrf.mxu0
    %564 = vmatprep.mubr.f32.mxu0 0.0
    %565 = vmatmul.mubr.f32.gmra.mxu0 %v221
    %v566 = vpop.f32.mrf.mxu0
    %v567 = vadd.f32 0.0, %v566
    %v568 = vpop.f32.mrf.mxu0
    %569 = vmatprep.mubr.f32.mxu0 0.0
    %570 = vmatmul.mubr.f32.gmra.mxu0 %v224
    %v571 = vpop.f32.mrf.mxu0
    %v572 = vadd.f32 0.0, %v571
    %v573 = vpop.f32.mrf.mxu0
    %574 = vmatprep.mubr.f32.mxu0 0.0
    %575 = vmatmul.mubr.f32.gmra.mxu0 %v227
    %v576 = vpop.f32.mrf.mxu0
    %v577 = vadd.f32 0.0, %v576
    %v578 = vpop.f32.mrf.mxu0
    %579 = vmatprep.mubr.f32.mxu0 0.0
    %580 = vmatmul.mubr.f32.gmra.mxu0 %v230
    %v581 = vpop.f32.mrf.mxu0
    %v582 = vadd.f32 0.0, %v581
    %v583 = vpop.f32.mrf.mxu0
    %584 = vmatprep.mubr.f32.mxu0 0.0
    %585 = vmatmul.mubr.f32.gmra.mxu0 %v233
    %v586 = vpop.f32.mrf.mxu0
    %v587 = vadd.f32 0.0, %v586
    %v588 = vpop.f32.mrf.mxu0
    %589 = vmatprep.mubr.f32.mxu0 0.0
    %590 = vmatmul.mubr.f32.gmra.mxu0 %v236
    %v591 = vpop.f32.mrf.mxu0
    %v592 = vadd.f32 0.0, %v591
    %v593 = vpop.f32.mrf.mxu0
    %594 = vmatprep.mubr.f32.mxu0 0.0
    %595 = vmatmul.mubr.f32.gmra.mxu0 %v239
    %v596 = vpop.f32.mrf.mxu0
    %v597 = vadd.f32 0.0, %v596
    %v598 = vpop.f32.mrf.mxu0
    %599 = vmatprep.mubr.f32.mxu0 0.0
    %600 = vmatmul.mubr.f32.gmra.mxu0 %v242
    %v601 = vpop.f32.mrf.mxu0
    %v602 = vadd.f32 0.0, %v601
    %v603 = vpop.f32.mrf.mxu0
    %604 = vmatprep.mubr.f32.mxu0 0.0
    %605 = vmatmul.mubr.f32.gmra.mxu0 %v245
    %v606 = vpop.f32.mrf.mxu0
    %v607 = vadd.f32 0.0, %v606
    %v608 = vpop.f32.mrf.mxu0
    %609 = vmatprep.mubr.f32.mxu0 0.0
    %610 = vmatmul.mubr.f32.gmra.mxu0 %v248
    %v611 = vpop.f32.mrf.mxu0
    %v612 = vadd.f32 0.0, %v611
    %v613 = vpop.f32.mrf.mxu0
    %614 = vmatprep.mubr.f32.mxu0 0.0
    %615 = vmatmul.mubr.f32.gmra.mxu0 %v251
    %v616 = vpop.f32.mrf.mxu0
    %v617 = vadd.f32 0.0, %v616
    %v618 = vpop.f32.mrf.mxu0
    %619 = vmatprep.mubr.f32.mxu0 0.0
    %620 = vmatmul.mubr.f32.gmra.mxu0 %v254
    %v621 = vpop.f32.mrf.mxu0
    %v622 = vadd.f32 0.0, %v621
    %v623 = vpop.f32.mrf.mxu0
    %624 = vmatprep.mubr.f32.mxu0 0.0
    %625 = vmatmul.mubr.f32.gmra.mxu0 %v257
    %v626 = vpop.f32.mrf.mxu0
    %v627 = vadd.f32 0.0, %v626
    %v628 = vpop.f32.mrf.mxu0
    %629 = vmatprep.mubr.f32.mxu0 0.0
    %630 = vmatmul.mubr.f32.gmra.mxu0 %v260
    %v631 = vpop.f32.mrf.mxu0
    %v632 = vadd.f32 0.0, %v631
    %v633 = vpop.f32.mrf.mxu0
    %634 = vmatprep.mubr.f32.mxu0 0.0
    %635 = vmatmul.mubr.f32.gmra.mxu0 %v263
    %v636 = vpop.f32.mrf.mxu0
    %v637 = vadd.f32 0.0, %v636
    %v638 = vpop.f32.mrf.mxu0
    %639 = vmatprep.mubr.f32.mxu0 0.0
    %640 = vmatmul.mubr.f32.gmra.mxu0 %v266
    %v641 = vpop.f32.mrf.mxu0
    %v642 = vadd.f32 0.0, %v641
    %v643 = vpop.f32.mrf.mxu0
    %644 = vmatprep.mubr.f32.mxu0 0.0
    %645 = vmatmul.mubr.f32.gmra.mxu0 %v269
    %v646 = vpop.f32.mrf.mxu0
    %v647 = vadd.f32 0.0, %v646
    %v648 = vpop.f32.mrf.mxu0
    %649 = vmatprep.mubr.f32.mxu0 0.0
    %650 = vmatmul.mubr.f32.gmra.mxu0 %v272
    %v651 = vpop.f32.mrf.mxu0
    %v652 = vadd.f32 0.0, %v651
    %v653 = vpop.f32.mrf.mxu0
    %654 = vmatprep.mubr.f32.mxu0 0.0
    %655 = vmatmul.mubr.f32.gmra.mxu0 %v275
    %v656 = vpop.f32.mrf.mxu0
    %v657 = vadd.f32 0.0, %v656
    %v658 = vpop.f32.mrf.mxu0
    %659 = vmatprep.mubr.f32.mxu0 0.0
    %660 = vmatmul.mubr.f32.gmra.mxu0 %v278
    %v661 = vpop.f32.mrf.mxu0
    %v662 = vadd.f32 0.0, %v661
    %v663 = vpop.f32.mrf.mxu0
    %664 = vmatprep.mubr.f32.mxu0 0.0
    %665 = vmatmul.mubr.f32.gmra.mxu0 %v281
    %v666 = vpop.f32.mrf.mxu0
    %v667 = vadd.f32 0.0, %v666
    %v668 = vpop.f32.mrf.mxu0
    %669 = vmatprep.mubr.f32.mxu0 0.0
    %670 = vmatmul.mubr.f32.gmra.mxu0 %v284
    %v671 = vpop.f32.mrf.mxu0
    %v672 = vadd.f32 0.0, %v671
    %v673 = vpop.f32.mrf.mxu0
    %674 = vdwg.mxu0
    %s675 = smul.u32 0, 512
    %s676 = scalar_lea.vmem [#allocation4], %s675
    %677 = vst [vmem:[%s676] sm:$0xff] %v357
    %678 = vst [vmem:[%s676 + $0x8] sm:$0xff] %v362
    %679 = vst [vmem:[%s676 + $0x10] sm:$0xff] %v367
    %680 = vst [vmem:[%s676 + $0x18] sm:$0xff] %v372
    %681 = vst [vmem:[%s676 + $0x20] sm:$0xff] %v377
    %682 = vst [vmem:[%s676 + $0x28] sm:$0xff] %v382
    %683 = vst [vmem:[%s676 + $0x30] sm:$0xff] %v387
    %684 = vst [vmem:[%s676 + $0x38] sm:$0xff] %v392
    %685 = vst [vmem:[%s676 + $0x40] sm:$0xff] %v397
    %686 = vst [vmem:[%s676 + $0x48] sm:$0xff] %v402
    %687 = vst [vmem:[%s676 + $0x50] sm:$0xff] %v407
    %688 = vst [vmem:[%s676 + $0x58] sm:$0xff] %v412
    %689 = vst [vmem:[%s676 + $0x60] sm:$0xff] %v417
    %690 = vst [vmem:[%s676 + $0x68] sm:$0xff] %v422
    %691 = vst [vmem:[%s676 + $0x70] sm:$0xff] %v427
    %692 = vst [vmem:[%s676 + $0x78] sm:$0xff] %v432
    %693 = vst [vmem:[%s676 + $0x80] sm:$0xff] %v437
    %694 = vst [vmem:[%s676 + $0x88] sm:$0xff] %v442
    %695 = vst [vmem:[%s676 + $0x90] sm:$0xff] %v447
    %696 = vst [vmem:[%s676 + $0x98] sm:$0xff] %v452
    %697 = vst [vmem:[%s676 + $0xa0] sm:$0xff] %v457
    %698 = vst [vmem:[%s676 + $0xa8] sm:$0xff] %v462
    %699 = vst [vmem:[%s676 + $0xb0] sm:$0xff] %v467
    %700 = vst [vmem:[%s676 + $0xb8] sm:$0xff] %v472
    %701 = vst [vmem:[%s676 + $0xc0] sm:$0xff] %v477
    %702 = vst [vmem:[%s676 + $0xc8] sm:$0xff] %v482
    %703 = vst [vmem:[%s676 + $0xd0] sm:$0xff] %v487
    %704 = vst [vmem:[%s676 + $0xd8] sm:$0xff] %v492
    %705 = vst [vmem:[%s676 + $0xe0] sm:$0xff] %v497
    %706 = vst [vmem:[%s676 + $0xe8] sm:$0xff] %v502
    %707 = vst [vmem:[%s676 + $0xf0] sm:$0xff] %v507
    %708 = vst [vmem:[%s676 + $0xf8] sm:$0xff] %v512
    %709 = vst [vmem:[%s676 + $0x100] sm:$0xff] %v517
    %710 = vst [vmem:[%s676 + $0x108] sm:$0xff] %v522
    %711 = vst [vmem:[%s676 + $0x110] sm:$0xff] %v527
    %712 = vst [vmem:[%s676 + $0x118] sm:$0xff] %v532
    %713 = vst [vmem:[%s676 + $0x120] sm:$0xff] %v537
    %714 = vst [vmem:[%s676 + $0x128] sm:$0xff] %v542
    %715 = vst [vmem:[%s676 + $0x130] sm:$0xff] %v547
    %716 = vst [vmem:[%s676 + $0x138] sm:$0xff] %v552
    %717 = vst [vmem:[%s676 + $0x140] sm:$0xff] %v557
    %718 = vst [vmem:[%s676 + $0x148] sm:$0xff] %v562
    %719 = vst [vmem:[%s676 + $0x150] sm:$0xff] %v567
    %720 = vst [vmem:[%s676 + $0x158] sm:$0xff] %v572
    %721 = vst [vmem:[%s676 + $0x160] sm:$0xff] %v577
    %722 = vst [vmem:[%s676 + $0x168] sm:$0xff] %v582
    %723 = vst [vmem:[%s676 + $0x170] sm:$0xff] %v587
    %724 = vst [vmem:[%s676 + $0x178] sm:$0xff] %v592
    %725 = vst [vmem:[%s676 + $0x180] sm:$0xff] %v597
    %726 = vst [vmem:[%s676 + $0x188] sm:$0xff] %v602
    %727 = vst [vmem:[%s676 + $0x190] sm:$0xff] %v607
    %728 = vst [vmem:[%s676 + $0x198] sm:$0xff] %v612
    %729 = vst [vmem:[%s676 + $0x1a0] sm:$0xff] %v617
    %730 = vst [vmem:[%s676 + $0x1a8] sm:$0xff] %v622
    %731 = vst [vmem:[%s676 + $0x1b0] sm:$0xff] %v627
    %732 = vst [vmem:[%s676 + $0x1b8] sm:$0xff] %v632
    %733 = vst [vmem:[%s676 + $0x1c0] sm:$0xff] %v637
    %734 = vst [vmem:[%s676 + $0x1c8] sm:$0xff] %v642
    %735 = vst [vmem:[%s676 + $0x1d0] sm:$0xff] %v647
    %736 = vst [vmem:[%s676 + $0x1d8] sm:$0xff] %v652
    %737 = vst [vmem:[%s676 + $0x1e0] sm:$0xff] %v657
    %738 = vst [vmem:[%s676 + $0x1e8] sm:$0xff] %v662
    %739 = vst [vmem:[%s676 + $0x1f0] sm:$0xff] %v667
    %740 = vst [vmem:[%s676 + $0x1f8] sm:$0xff] %v672
    %v741 = vld [vmem:[#allocation2] sm:$0x1]
    %v742 = vadd.f32 %v357, %v362
    %v743 = vadd.f32 %v742, %v367
    %v744 = vadd.f32 %v743, %v372
    %v745 = vadd.f32 %v744, %v377
    %v746 = vadd.f32 %v745, %v382
    %v747 = vadd.f32 %v746, %v387
    %v748 = vadd.f32 %v747, %v392
    %v749 = vadd.f32 %v748, %v397
    %v750 = vadd.f32 %v749, %v402
    %v751 = vadd.f32 %v750, %v407
    %v752 = vadd.f32 %v751, %v412
    %v753 = vadd.f32 %v752, %v417
    %v754 = vadd.f32 %v753, %v422
    %v755 = vadd.f32 %v754, %v427
    %v756 = vadd.f32 %v755, %v432
    %v757 = vadd.f32 %v756, %v437
    %v758 = vadd.f32 %v757, %v442
    %v759 = vadd.f32 %v758, %v447
    %v760 = vadd.f32 %v759, %v452
    %v761 = vadd.f32 %v760, %v457
    %v762 = vadd.f32 %v761, %v462
    %v763 = vadd.f32 %v762, %v467
    %v764 = vadd.f32 %v763, %v472
    %v765 = vadd.f32 %v764, %v477
    %v766 = vadd.f32 %v765, %v482
    %v767 = vadd.f32 %v766, %v487
    %v768 = vadd.f32 %v767, %v492
    %v769 = vadd.f32 %v768, %v497
    %v770 = vadd.f32 %v769, %v502
    %v771 = vadd.f32 %v770, %v507
    %v772 = vadd.f32 %v771, %v512
    %v773 = vadd.f32 %v772, %v517
    %v774 = vadd.f32 %v773, %v522
    %v775 = vadd.f32 %v774, %v527
    %v776 = vadd.f32 %v775, %v532
    %v777 = vadd.f32 %v776, %v537
    %v778 = vadd.f32 %v777, %v542
    %v779 = vadd.f32 %v778, %v547
    %v780 = vadd.f32 %v779, %v552
    %v781 = vadd.f32 %v780, %v557
    %v782 = vadd.f32 %v781, %v562
    %v783 = vadd.f32 %v782, %v567
    %v784 = vadd.f32 %v783, %v572
    %v785 = vadd.f32 %v784, %v577
    %v786 = vadd.f32 %v785, %v582
    %v787 = vadd.f32 %v786, %v587
    %v788 = vadd.f32 %v787, %v592
    %v789 = vadd.f32 %v788, %v597
    %v790 = vadd.f32 %v789, %v602
    %v791 = vadd.f32 %v790, %v607
    %v792 = vadd.f32 %v791, %v612
    %v793 = vadd.f32 %v792, %v617
    %v794 = vadd.f32 %v793, %v622
    %v795 = vadd.f32 %v794, %v627
    %v796 = vadd.f32 %v795, %v632
    %v797 = vadd.f32 %v796, %v637
    %v798 = vadd.f32 %v797, %v642
    %v799 = vadd.f32 %v798, %v647
    %v800 = vadd.f32 %v799, %v652
    %v801 = vadd.f32 %v800, %v657
    %v802 = vadd.f32 %v801, %v662
    %v803 = vadd.f32 %v802, %v667
    %v804 = vadd.f32 %v803, %v672
    %v805 = vrot.slane %v804, 4
    %v806 = vadd.f32 %v804, %v805
    %v807 = vrot.slane %v806, 2
    %v808 = vadd.f32 %v806, %v807
    %v809 = vrot.slane %v808, 1
    %v810 = vadd.f32 %v808, %v809
    %v811 = vadd.f32 %v741, %v810
    %812 = vst [vmem:[#allocation2] sm:$0x1] %v811
    %v813 = vld [vmem:[#allocation3] sm:$0x1]
    %v814 = vmul.f32 %v357, %v357
    %v815 = vmul.f32 %v362, %v362
    %v816 = vmul.f32 %v367, %v367
    %v817 = vmul.f32 %v372, %v372
    %v818 = vmul.f32 %v377, %v377
    %v819 = vmul.f32 %v382, %v382
    %v820 = vmul.f32 %v387, %v387
    %v821 = vmul.f32 %v392, %v392
    %v822 = vmul.f32 %v397, %v397
    %v823 = vmul.f32 %v402, %v402
    %v824 = vmul.f32 %v407, %v407
    %v825 = vmul.f32 %v412, %v412
    %v826 = vmul.f32 %v417, %v417
    %v827 = vmul.f32 %v422, %v422
    %v828 = vmul.f32 %v427, %v427
    %v829 = vmul.f32 %v432, %v432
    %v830 = vmul.f32 %v437, %v437
    %v831 = vmul.f32 %v442, %v442
    %v832 = vmul.f32 %v447, %v447
    %v833 = vmul.f32 %v452, %v452
    %v834 = vmul.f32 %v457, %v457
    %v835 = vmul.f32 %v462, %v462
    %v836 = vmul.f32 %v467, %v467
    %v837 = vmul.f32 %v472, %v472
    %v838 = vmul.f32 %v477, %v477
    %v839 = vmul.f32 %v482, %v482
    %v840 = vmul.f32 %v487, %v487
    %v841 = vmul.f32 %v492, %v492
    %v842 = vmul.f32 %v497, %v497
    %v843 = vmul.f32 %v502, %v502
    %v844 = vmul.f32 %v507, %v507
    %v845 = vmul.f32 %v512, %v512
    %v846 = vmul.f32 %v517, %v517
    %v847 = vmul.f32 %v522, %v522
    %v848 = vmul.f32 %v527, %v527
    %v849 = vmul.f32 %v532, %v532
    %v850 = vmul.f32 %v537, %v537
    %v851 = vmul.f32 %v542, %v542
    %v852 = vmul.f32 %v547, %v547
    %v853 = vmul.f32 %v552, %v552
    %v854 = vmul.f32 %v557, %v557
    %v855 = vmul.f32 %v562, %v562
    %v856 = vmul.f32 %v567, %v567
    %v857 = vmul.f32 %v572, %v572
    %v858 = vmul.f32 %v577, %v577
    %v859 = vmul.f32 %v582, %v582
    %v860 = vmul.f32 %v587, %v587
    %v861 = vmul.f32 %v592, %v592
    %v862 = vmul.f32 %v597, %v597
    %v863 = vmul.f32 %v602, %v602
    %v864 = vmul.f32 %v607, %v607
    %v865 = vmul.f32 %v612, %v612
    %v866 = vmul.f32 %v617, %v617
    %v867 = vmul.f32 %v622, %v622
    %v868 = vmul.f32 %v627, %v627
    %v869 = vmul.f32 %v632, %v632
    %v870 = vmul.f32 %v637, %v637
    %v871 = vmul.f32 %v642, %v642
    %v872 = vmul.f32 %v647, %v647
    %v873 = vmul.f32 %v652, %v652
    %v874 = vmul.f32 %v657, %v657
    %v875 = vmul.f32 %v662, %v662
    %v876 = vmul.f32 %v667, %v667
    %v877 = vmul.f32 %v672, %v672
    %v878 = vadd.f32 %v814, %v815
    %v879 = vadd.f32 %v878, %v816
    %v880 = vadd.f32 %v879, %v817
    %v881 = vadd.f32 %v880, %v818
    %v882 = vadd.f32 %v881, %v819
    %v883 = vadd.f32 %v882, %v820
    %v884 = vadd.f32 %v883, %v821
    %v885 = vadd.f32 %v884, %v822
    %v886 = vadd.f32 %v885, %v823
    %v887 = vadd.f32 %v886, %v824
    %v888 = vadd.f32 %v887, %v825
    %v889 = vadd.f32 %v888, %v826
    %v890 = vadd.f32 %v889, %v827
    %v891 = vadd.f32 %v890, %v828
    %v892 = vadd.f32 %v891, %v829
    %v893 = vadd.f32 %v892, %v830
    %v894 = vadd.f32 %v893, %v831
    %v895 = vadd.f32 %v894, %v832
    %v896 = vadd.f32 %v895, %v833
    %v897 = vadd.f32 %v896, %v834
    %v898 = vadd.f32 %v897, %v835
    %v899 = vadd.f32 %v898, %v836
    %v900 = vadd.f32 %v899, %v837
    %v901 = vadd.f32 %v900, %v838
    %v902 = vadd.f32 %v901, %v839
    %v903 = vadd.f32 %v902, %v840
    %v904 = vadd.f32 %v903, %v841
    %v905 = vadd.f32 %v904, %v842
    %v906 = vadd.f32 %v905, %v843
    %v907 = vadd.f32 %v906, %v844
    %v908 = vadd.f32 %v907, %v845
    %v909 = vadd.f32 %v908, %v846
    %v910 = vadd.f32 %v909, %v847
    %v911 = vadd.f32 %v910, %v848
    %v912 = vadd.f32 %v911, %v849
    %v913 = vadd.f32 %v912, %v850
    %v914 = vadd.f32 %v913, %v851
    %v915 = vadd.f32 %v914, %v852
    %v916 = vadd.f32 %v915, %v853
    %v917 = vadd.f32 %v916, %v854
    %v918 = vadd.f32 %v917, %v855
    %v919 = vadd.f32 %v918, %v856
    %v920 = vadd.f32 %v919, %v857
    %v921 = vadd.f32 %v920, %v858
    %v922 = vadd.f32 %v921, %v859
    %v923 = vadd.f32 %v922, %v860
    %v924 = vadd.f32 %v923, %v861
    %v925 = vadd.f32 %v924, %v862
    %v926 = vadd.f32 %v925, %v863
    %v927 = vadd.f32 %v926, %v864
    %v928 = vadd.f32 %v927, %v865
    %v929 = vadd.f32 %v928, %v866
    %v930 = vadd.f32 %v929, %v867
    %v931 = vadd.f32 %v930, %v868
    %v932 = vadd.f32 %v931, %v869
    %v933 = vadd.f32 %v932, %v870
    %v934 = vadd.f32 %v933, %v871
    %v935 = vadd.f32 %v934, %v872
    %v936 = vadd.f32 %v935, %v873
    %v937 = vadd.f32 %v936, %v874
    %v938 = vadd.f32 %v937, %v875
    %v939 = vadd.f32 %v938, %v876
    %v940 = vadd.f32 %v939, %v877
    %v941 = vrot.slane %v940, 4
    %v942 = vadd.f32 %v940, %v941
    %v943 = vrot.slane %v942, 2
    %v944 = vadd.f32 %v942, %v943
    %v945 = vrot.slane %v944, 1
    %v946 = vadd.f32 %v944, %v945
    %v947 = vadd.f32 %v813, %v946
    %948 = vst [vmem:[#allocation3] sm:$0x1] %v947
    // Predicated region
    $region22: #{tpu_custom_call.1} parent=1 // pred_check
      %p949 = pneg %p18
    $region23: #{tpu_custom_call.1} parent=1 // pred_check_branch
      %951 = sbr.rel (%p949) target = $region25
    $region24: #{tpu_custom_call.1} parent=1 // pred_region
      %v952 = vld [vmem:[#allocation2] sm:$0x1]
      %v953 = vmul.f32 %v952, 0.001953125
      %v954 = vld [vmem:[#allocation3] sm:$0x1]
      %v955 = vmul.f32 %v954, 0.001953125
      %v956 = vmul.f32 %v953, %v953
      %v957 = vsub.f32 %v955, %v956
      %v958 = vld [vmem:[%s2] sm:$0x1]
      %v959 = vadd.f32 %v957, 0.001
      %v960 = vrsqrt.pop %v959
      %v961 = vmul.f32 %v958, %v960
      %v962 = vld [vmem:[%s3] sm:$0x1]
      %v963 = vmul.f32 %v953, %v961
      %v964 = vsub.f32 %v962, %v963
      %v965 = vld [vmem:[#allocation4] sm:$0xff]
      %v966 = vld [vmem:[#allocation4 + $0x8] sm:$0xff]
      %v967 = vld [vmem:[#allocation4 + $0x10] sm:$0xff]
      %v968 = vld [vmem:[#allocation4 + $0x18] sm:$0xff]
      %v969 = vld [vmem:[#allocation4 + $0x20] sm:$0xff]
      %v970 = vld [vmem:[#allocation4 + $0x28] sm:$0xff]
      %v971 = vld [vmem:[#allocation4 + $0x30] sm:$0xff]
      %v972 = vld [vmem:[#allocation4 + $0x38] sm:$0xff]
      %v973 = vld [vmem:[#allocation4 + $0x40] sm:$0xff]
      %v974 = vld [vmem:[#allocation4 + $0x48] sm:$0xff]
      %v975 = vld [vmem:[#allocation4 + $0x50] sm:$0xff]
      %v976 = vld [vmem:[#allocation4 + $0x58] sm:$0xff]
      %v977 = vld [vmem:[#allocation4 + $0x60] sm:$0xff]
      %v978 = vld [vmem:[#allocation4 + $0x68] sm:$0xff]
      %v979 = vld [vmem:[#allocation4 + $0x70] sm:$0xff]
      %v980 = vld [vmem:[#allocation4 + $0x78] sm:$0xff]
      %v981 = vld [vmem:[#allocation4 + $0x80] sm:$0xff]
      %v982 = vld [vmem:[#allocation4 + $0x88] sm:$0xff]
      %v983 = vld [vmem:[#allocation4 + $0x90] sm:$0xff]
      %v984 = vld [vmem:[#allocation4 + $0x98] sm:$0xff]
      %v985 = vld [vmem:[#allocation4 + $0xa0] sm:$0xff]
      %v986 = vld [vmem:[#allocation4 + $0xa8] sm:$0xff]
      %v987 = vld [vmem:[#allocation4 + $0xb0] sm:$0xff]
      %v988 = vld [vmem:[#allocation4 + $0xb8] sm:$0xff]
      %v989 = vld [vmem:[#allocation4 + $0xc0] sm:$0xff]
      %v990 = vld [vmem:[#allocation4 + $0xc8] sm:$0xff]
      %v991 = vld [vmem:[#allocation4 + $0xd0] sm:$0xff]
      %v992 = vld [vmem:[#allocation4 + $0xd8] sm:$0xff]
      %v993 = vld [vmem:[#allocation4 + $0xe0] sm:$0xff]
      %v994 = vld [vmem:[#allocation4 + $0xe8] sm:$0xff]
      %v995 = vld [vmem:[#allocation4 + $0xf0] sm:$0xff]
      %v996 = vld [vmem:[#allocation4 + $0xf8] sm:$0xff]
      %v997 = vld [vmem:[#allocation4 + $0x100] sm:$0xff]
      %v998 = vld [vmem:[#allocation4 + $0x108] sm:$0xff]
      %v999 = vld [vmem:[#allocation4 + $0x110] sm:$0xff]
      %v1000 = vld [vmem:[#allocation4 + $0x118] sm:$0xff]
      %v1001 = vld [vmem:[#allocation4 + $0x120] sm:$0xff]
      %v1002 = vld [vmem:[#allocation4 + $0x128] sm:$0xff]
      %v1003 = vld [vmem:[#allocation4 + $0x130] sm:$0xff]
      %v1004 = vld [vmem:[#allocation4 + $0x138] sm:$0xff]
      %v1005 = vld [vmem:[#allocation4 + $0x140] sm:$0xff]
      %v1006 = vld [vmem:[#allocation4 + $0x148] sm:$0xff]
      %v1007 = vld [vmem:[#allocation4 + $0x150] sm:$0xff]
      %v1008 = vld [vmem:[#allocation4 + $0x158] sm:$0xff]
      %v1009 = vld [vmem:[#allocation4 + $0x160] sm:$0xff]
      %v1010 = vld [vmem:[#allocation4 + $0x168] sm:$0xff]
      %v1011 = vld [vmem:[#allocation4 + $0x170] sm:$0xff]
      %v1012 = vld [vmem:[#allocation4 + $0x178] sm:$0xff]
      %v1013 = vld [vmem:[#allocation4 + $0x180] sm:$0xff]
      %v1014 = vld [vmem:[#allocation4 + $0x188] sm:$0xff]
      %v1015 = vld [vmem:[#allocation4 + $0x190] sm:$0xff]
      %v1016 = vld [vmem:[#allocation4 + $0x198] sm:$0xff]
      %v1017 = vld [vmem:[#allocation4 + $0x1a0] sm:$0xff]
      %v1018 = vld [vmem:[#allocation4 + $0x1a8] sm:$0xff]
      %v1019 = vld [vmem:[#allocation4 + $0x1b0] sm:$0xff]
      %v1020 = vld [vmem:[#allocation4 + $0x1b8] sm:$0xff]
      %v1021 = vld [vmem:[#allocation4 + $0x1c0] sm:$0xff]
      %v1022 = vld [vmem:[#allocation4 + $0x1c8] sm:$0xff]
      %v1023 = vld [vmem:[#allocation4 + $0x1d0] sm:$0xff]
      %v1024 = vld [vmem:[#allocation4 + $0x1d8] sm:$0xff]
      %v1025 = vld [vmem:[#allocation4 + $0x1e0] sm:$0xff]
      %v1026 = vld [vmem:[#allocation4 + $0x1e8] sm:$0xff]
      %v1027 = vld [vmem:[#allocation4 + $0x1f0] sm:$0xff]
      %v1028 = vld [vmem:[#allocation4 + $0x1f8] sm:$0xff]
      %v1030 = vlaneseq
      %v1031 = vshrl.u32 %v1030, 7
      %v1032 = vsub.s32 0, %v1031
      %v1033 = vrot.slane %v961, %v1032
      %v1035 = vmul.f32 %v965, %v1033
      %v1036 = vmul.f32 %v966, %v1033
      %v1037 = vmul.f32 %v967, %v1033
      %v1038 = vmul.f32 %v968, %v1033
      %v1039 = vmul.f32 %v969, %v1033
      %v1040 = vmul.f32 %v970, %v1033
      %v1041 = vmul.f32 %v971, %v1033
      %v1042 = vmul.f32 %v972, %v1033
      %v1043 = vmul.f32 %v973, %v1033
      %v1044 = vmul.f32 %v974, %v1033
      %v1045 = vmul.f32 %v975, %v1033
      %v1046 = vmul.f32 %v976, %v1033
      %v1047 = vmul.f32 %v977, %v1033
      %v1048 = vmul.f32 %v978, %v1033
      %v1049 = vmul.f32 %v979, %v1033
      %v1050 = vmul.f32 %v980, %v1033
      %v1051 = vmul.f32 %v981, %v1033
      %v1052 = vmul.f32 %v982, %v1033
      %v1053 = vmul.f32 %v983, %v1033
      %v1054 = vmul.f32 %v984, %v1033
      %v1055 = vmul.f32 %v985, %v1033
      %v1056 = vmul.f32 %v986, %v1033
      %v1057 = vmul.f32 %v987, %v1033
      %v1058 = vmul.f32 %v988, %v1033
      %v1059 = vmul.f32 %v989, %v1033
      %v1060 = vmul.f32 %v990, %v1033
      %v1061 = vmul.f32 %v991, %v1033
      %v1062 = vmul.f32 %v992, %v1033
      %v1063 = vmul.f32 %v993, %v1033
      %v1064 = vmul.f32 %v994, %v1033
      %v1065 = vmul.f32 %v995, %v1033
      %v1066 = vmul.f32 %v996, %v1033
      %v1067 = vmul.f32 %v997, %v1033
      %v1068 = vmul.f32 %v998, %v1033
      %v1069 = vmul.f32 %v999, %v1033
      %v1070 = vmul.f32 %v1000, %v1033
      %v1071 = vmul.f32 %v1001, %v1033
      %v1072 = vmul.f32 %v1002, %v1033
      %v1073 = vmul.f32 %v1003, %v1033
      %v1074 = vmul.f32 %v1004, %v1033
      %v1075 = vmul.f32 %v1005, %v1033
      %v1076 = vmul.f32 %v1006, %v1033
      %v1077 = vmul.f32 %v1007, %v1033
      %v1078 = vmul.f32 %v1008, %v1033
      %v1079 = vmul.f32 %v1009, %v1033
      %v1080 = vmul.f32 %v1010, %v1033
      %v1081 = vmul.f32 %v1011, %v1033
      %v1082 = vmul.f32 %v1012, %v1033
      %v1083 = vmul.f32 %v1013, %v1033
      %v1084 = vmul.f32 %v1014, %v1033
      %v1085 = vmul.f32 %v1015, %v1033
      %v1086 = vmul.f32 %v1016, %v1033
      %v1087 = vmul.f32 %v1017, %v1033
      %v1088 = vmul.f32 %v1018, %v1033
      %v1089 = vmul.f32 %v1019, %v1033
      %v1090 = vmul.f32 %v1020, %v1033
      %v1091 = vmul.f32 %v1021, %v1033
      %v1092 = vmul.f32 %v1022, %v1033
      %v1093 = vmul.f32 %v1023, %v1033
      %v1094 = vmul.f32 %v1024, %v1033
      %v1095 = vmul.f32 %v1025, %v1033
      %v1096 = vmul.f32 %v1026, %v1033
      %v1097 = vmul.f32 %v1027, %v1033
      %v1098 = vmul.f32 %v1028, %v1033
      %v1100 = vlaneseq
      %v1101 = vshrl.u32 %v1100, 7
      %v1102 = vsub.s32 0, %v1101
      %v1103 = vrot.slane %v964, %v1102
      %v1105 = vadd.f32 %v1035, %v1103
      %v1106 = vadd.f32 %v1036, %v1103
      %v1107 = vadd.f32 %v1037, %v1103
      %v1108 = vadd.f32 %v1038, %v1103
      %v1109 = vadd.f32 %v1039, %v1103
      %v1110 = vadd.f32 %v1040, %v1103
      %v1111 = vadd.f32 %v1041, %v1103
      %v1112 = vadd.f32 %v1042, %v1103
      %v1113 = vadd.f32 %v1043, %v1103
      %v1114 = vadd.f32 %v1044, %v1103
      %v1115 = vadd.f32 %v1045, %v1103
      %v1116 = vadd.f32 %v1046, %v1103
      %v1117 = vadd.f32 %v1047, %v1103
      %v1118 = vadd.f32 %v1048, %v1103
      %v1119 = vadd.f32 %v1049, %v1103
      %v1120 = vadd.f32 %v1050, %v1103
      %v1121 = vadd.f32 %v1051, %v1103
      %v1122 = vadd.f32 %v1052, %v1103
      %v1123 = vadd.f32 %v1053, %v1103
      %v1124 = vadd.f32 %v1054, %v1103
      %v1125 = vadd.f32 %v1055, %v1103
      %v1126 = vadd.f32 %v1056, %v1103
      %v1127 = vadd.f32 %v1057, %v1103
      %v1128 = vadd.f32 %v1058, %v1103
      %v1129 = vadd.f32 %v1059, %v1103
      %v1130 = vadd.f32 %v1060, %v1103
      %v1131 = vadd.f32 %v1061, %v1103
      %v1132 = vadd.f32 %v1062, %v1103
      %v1133 = vadd.f32 %v1063, %v1103
      %v1134 = vadd.f32 %v1064, %v1103
      %v1135 = vadd.f32 %v1065, %v1103
      %v1136 = vadd.f32 %v1066, %v1103
      %v1137 = vadd.f32 %v1067, %v1103
      %v1138 = vadd.f32 %v1068, %v1103
      %v1139 = vadd.f32 %v1069, %v1103
      %v1140 = vadd.f32 %v1070, %v1103
      %v1141 = vadd.f32 %v1071, %v1103
      %v1142 = vadd.f32 %v1072, %v1103
      %v1143 = vadd.f32 %v1073, %v1103
      %v1144 = vadd.f32 %v1074, %v1103
      %v1145 = vadd.f32 %v1075, %v1103
      %v1146 = vadd.f32 %v1076, %v1103
      %v1147 = vadd.f32 %v1077, %v1103
      %v1148 = vadd.f32 %v1078, %v1103
      %v1149 = vadd.f32 %v1079, %v1103
      %v1150 = vadd.f32 %v1080, %v1103
      %v1151 = vadd.f32 %v1081, %v1103
      %v1152 = vadd.f32 %v1082, %v1103
      %v1153 = vadd.f32 %v1083, %v1103
      %v1154 = vadd.f32 %v1084, %v1103
      %v1155 = vadd.f32 %v1085, %v1103
      %v1156 = vadd.f32 %v1086, %v1103
      %v1157 = vadd.f32 %v1087, %v1103
      %v1158 = vadd.f32 %v1088, %v1103
      %v1159 = vadd.f32 %v1089, %v1103
      %v1160 = vadd.f32 %v1090, %v1103
      %v1161 = vadd.f32 %v1091, %v1103
      %v1162 = vadd.f32 %v1092, %v1103
      %v1163 = vadd.f32 %v1093, %v1103
      %v1164 = vadd.f32 %v1094, %v1103
      %v1165 = vadd.f32 %v1095, %v1103
      %v1166 = vadd.f32 %v1096, %v1103
      %v1167 = vadd.f32 %v1097, %v1103
      %v1168 = vadd.f32 %v1098, %v1103
      %1169 = vst [vmem:[#allocation4] sm:$0xff] %v1105
      %1170 = vst [vmem:[#allocation4 + $0x8] sm:$0xff] %v1106
      %1171 = vst [vmem:[#allocation4 + $0x10] sm:$0xff] %v1107
      %1172 = vst [vmem:[#allocation4 + $0x18] sm:$0xff] %v1108
      %1173 = vst [vmem:[#allocation4 + $0x20] sm:$0xff] %v1109
      %1174 = vst [vmem:[#allocation4 + $0x28] sm:$0xff] %v1110
      %1175 = vst [vmem:[#allocation4 + $0x30] sm:$0xff] %v1111
      %1176 = vst [vmem:[#allocation4 + $0x38] sm:$0xff] %v1112
      %1177 = vst [vmem:[#allocation4 + $0x40] sm:$0xff] %v1113
      %1178 = vst [vmem:[#allocation4 + $0x48] sm:$0xff] %v1114
      %1179 = vst [vmem:[#allocation4 + $0x50] sm:$0xff] %v1115
      %1180 = vst [vmem:[#allocation4 + $0x58] sm:$0xff] %v1116
      %1181 = vst [vmem:[#allocation4 + $0x60] sm:$0xff] %v1117
      %1182 = vst [vmem:[#allocation4 + $0x68] sm:$0xff] %v1118
      %1183 = vst [vmem:[#allocation4 + $0x70] sm:$0xff] %v1119
      %1184 = vst [vmem:[#allocation4 + $0x78] sm:$0xff] %v1120
      %1185 = vst [vmem:[#allocation4 + $0x80] sm:$0xff] %v1121
      %1186 = vst [vmem:[#allocation4 + $0x88] sm:$0xff] %v1122
      %1187 = vst [vmem:[#allocation4 + $0x90] sm:$0xff] %v1123
      %1188 = vst [vmem:[#allocation4 + $0x98] sm:$0xff] %v1124
      %1189 = vst [vmem:[#allocation4 + $0xa0] sm:$0xff] %v1125
      %1190 = vst [vmem:[#allocation4 + $0xa8] sm:$0xff] %v1126
      %1191 = vst [vmem:[#allocation4 + $0xb0] sm:$0xff] %v1127
      %1192 = vst [vmem:[#allocation4 + $0xb8] sm:$0xff] %v1128
      %1193 = vst [vmem:[#allocation4 + $0xc0] sm:$0xff] %v1129
      %1194 = vst [vmem:[#allocation4 + $0xc8] sm:$0xff] %v1130
      %1195 = vst [vmem:[#allocation4 + $0xd0] sm:$0xff] %v1131
      %1196 = vst [vmem:[#allocation4 + $0xd8] sm:$0xff] %v1132
      %1197 = vst [vmem:[#allocation4 + $0xe0] sm:$0xff] %v1133
      %1198 = vst [vmem:[#allocation4 + $0xe8] sm:$0xff] %v1134
      %1199 = vst [vmem:[#allocation4 + $0xf0] sm:$0xff] %v1135
      %1200 = vst [vmem:[#allocation4 + $0xf8] sm:$0xff] %v1136
      %1201 = vst [vmem:[#allocation4 + $0x100] sm:$0xff] %v1137
      %1202 = vst [vmem:[#allocation4 + $0x108] sm:$0xff] %v1138
      %1203 = vst [vmem:[#allocation4 + $0x110] sm:$0xff] %v1139
      %1204 = vst [vmem:[#allocation4 + $0x118] sm:$0xff] %v1140
      %1205 = vst [vmem:[#allocation4 + $0x120] sm:$0xff] %v1141
      %1206 = vst [vmem:[#allocation4 + $0x128] sm:$0xff] %v1142
      %1207 = vst [vmem:[#allocation4 + $0x130] sm:$0xff] %v1143
      %1208 = vst [vmem:[#allocation4 + $0x138] sm:$0xff] %v1144
      %1209 = vst [vmem:[#allocation4 + $0x140] sm:$0xff] %v1145
      %1210 = vst [vmem:[#allocation4 + $0x148] sm:$0xff] %v1146
      %1211 = vst [vmem:[#allocation4 + $0x150] sm:$0xff] %v1147
      %1212 = vst [vmem:[#allocation4 + $0x158] sm:$0xff] %v1148
      %1213 = vst [vmem:[#allocation4 + $0x160] sm:$0xff] %v1149
      %1214 = vst [vmem:[#allocation4 + $0x168] sm:$0xff] %v1150
      %1215 = vst [vmem:[#allocation4 + $0x170] sm:$0xff] %v1151
      %1216 = vst [vmem:[#allocation4 + $0x178] sm:$0xff] %v1152
      %1217 = vst [vmem:[#allocation4 + $0x180] sm:$0xff] %v1153
      %1218 = vst [vmem:[#allocation4 + $0x188] sm:$0xff] %v1154
      %1219 = vst [vmem:[#allocation4 + $0x190] sm:$0xff] %v1155
      %1220 = vst [vmem:[#allocation4 + $0x198] sm:$0xff] %v1156
      %1221 = vst [vmem:[#allocation4 + $0x1a0] sm:$0xff] %v1157
      %1222 = vst [vmem:[#allocation4 + $0x1a8] sm:$0xff] %v1158
      %1223 = vst [vmem:[#allocation4 + $0x1b0] sm:$0xff] %v1159
      %1224 = vst [vmem:[#allocation4 + $0x1b8] sm:$0xff] %v1160
      %1225 = vst [vmem:[#allocation4 + $0x1c0] sm:$0xff] %v1161
      %1226 = vst [vmem:[#allocation4 + $0x1c8] sm:$0xff] %v1162
      %1227 = vst [vmem:[#allocation4 + $0x1d0] sm:$0xff] %v1163
      %1228 = vst [vmem:[#allocation4 + $0x1d8] sm:$0xff] %v1164
      %1229 = vst [vmem:[#allocation4 + $0x1e0] sm:$0xff] %v1165
      %1230 = vst [vmem:[#allocation4 + $0x1e8] sm:$0xff] %v1166
      %1231 = vst [vmem:[#allocation4 + $0x1f0] sm:$0xff] %v1167
      %1232 = vst [vmem:[#allocation4 + $0x1f8] sm:$0xff] %v1168
    $region25: #{tpu_custom_call.1} parent=1 // pred_fallthru
      _
    // Predicated region
    $region26: #{tpu_custom_call.1} parent=1 // pred_check
      _
    $region27: #{tpu_custom_call.1} parent=1 // pred_check_branch
      %1234 = sbr.rel (0) target = $region29
    $region28: #{tpu_custom_call.1} parent=1 // pred_region
      %s1236 = ssub.s32 8192, 8192
      %1237 = vsyncadd [#allocation5], %s1236
      %s1238 = sshll.u32 [#allocation4], 4
      %s1239 = int_to_ptr.vmem [resolvable:$true] %s1238
      %1244 = dma.vmem_to_hbm [thread:$0]  %s1239, 8192, %s4, [#allocation5], 128, 128, 8
    $region29: #{tpu_custom_call.1} parent=1 // pred_fallthru
      _
    // Predicated region
    $region30: #{tpu_custom_call.1} parent=1 // pred_check
      _
    $region31: #{tpu_custom_call.1} parent=1 // pred_check_branch
      %1246 = sbr.rel (0) target = $region33
    $region32: #{tpu_custom_call.1} parent=1 // pred_region
      %1247 = dma.done [#allocation5], 8192
    $region33: #{tpu_custom_call.1} parent=1 // pred_fallthru
      _
    %1248 = vsyncpa [#allocation5], 1

</llo_original>
